<compile_context>
chip_gen: v7x
topology: tpu7x:2x2x1
jax: 0.10.0
libtpu: 0.0.40
codegen_flags: <defaults>
</compile_context>

<pallas_src>
import jax
import jax.numpy as jnp
from jax.experimental import pallas as pl
from jax.experimental.pallas import tpu as pltpu


# ----------------------------- Pallas kernel ------------------------------ #
def _swish_kernel(x_ref, o_ref):
    x = x_ref[...]
    # x * sigmoid(x).  exp + reciprocal land in the EUP slot; mul/add in the
    # VPU — compute never becomes the binding slot for this mem-bound op.
    o_ref[...] = x * pl.reciprocal(1.0 + jnp.exp(-x), approx=False)


def _swish_pallas_2d(x2d, *, target_block_bytes=1 << 20, min_grid_steps=8):
    """Elementwise swish over a lane-dense (R, L) slab, L a multiple of 128."""
    R, L = x2d.shape
    itemsize = jnp.dtype(x2d.dtype).itemsize

    # Rows per block so one block is ~target_block_bytes, rounded down to a
    # multiple of 8 sublanes (>= 8).
    block_rows = max(8, ((target_block_bytes // itemsize) // L) // 8 * 8)

    # Keep at least `min_grid_steps` grid steps on large tensors so the
    # parallel axis can be split across TensorCores (v7x megacore).
    if R // block_rows < min_grid_steps and R >= min_grid_steps * 8:
        block_rows = max(8, (R // min_grid_steps) // 8 * 8)

    # Small tensors: a single full-array block (legal even if R % 8 != 0).
    if R <= block_rows:
        block_rows = R

    grid = (pl.cdiv(R, block_rows),)

    return pl.pallas_call(
        _swish_kernel,
        out_shape=jax.ShapeDtypeStruct((R, L), x2d.dtype),
        grid_spec=pl.GridSpec(
            grid=grid,
            in_specs=[pl.BlockSpec((block_rows, L), lambda i: (i, 0))],
            out_specs=pl.BlockSpec((block_rows, L), lambda i: (i, 0)),
        ),
        compiler_params=pltpu.CompilerParams(
            dimension_semantics=("parallel",),
        ),
    )(x2d)


# ----------------------- ModuleAdapter JAX equivalent ---------------------- #
class ModuleAdapter:
    """JAX analog of cadgan.net.net.ModuleAdapter: forward() == f(*args)."""

    def __init__(self, f):
        self.f = f

    def __call__(self, *args, **kwargs):
        return self.forward(*args, **kwargs)

    def forward(self, *args, **kwargs):
        return self.f(*args, **kwargs)


def pallas_swish_nchw(x):
    """The concrete callable `f` wrapped by ModuleAdapter.

    x: (N, C, H, W) float32.  Elementwise x * sigmoid(x).
    """
    n, c, h, w = x.shape
    total = n * c * h * w
    flat = x.reshape(total)

    # Lane-dense last dim: the largest multiple of 128 (capped at 2048) that
    # divides the total element count.
    L = None
    for cand in (2048, 1024, 512, 256, 128):
        if total % cand == 0:
            L = cand
            break
    if L is None:
        # TODO(synk): rare fallback when total is not a multiple of 128 —
        # minimal flat pad (< 128 elements of logical padding).
        L = 128
        flat = jnp.pad(flat, (0, (-total) % L))

    rows = flat.shape[0] // L
    y2d = _swish_pallas_2d(flat.reshape(rows, L))
    return y2d.reshape(-1)[:total].reshape(n, c, h, w)


# ---------------------------------- main ----------------------------------- #
if __name__ == "__main__":
    key = jax.random.PRNGKey(0)
    # Small NCHW input consistent with a conv-style feature map.
    x = jax.random.normal(key, (2, 4, 16, 16), dtype=jnp.float32)

    adapter = ModuleAdapter(pallas_swish_nchw)
    y = adapter(x)
    y = jax.block_until_ready(y)

    # Correctness check against the plain-JAX reference of f.
    y_ref = x * jax.nn.sigmoid(x)
    assert y.shape == x.shape and y.dtype == x.dtype
    assert jnp.max(jnp.abs(y - y_ref)) < 1e-5

    print("KERNEL_OK")
</pallas_src>

<mosaic_0001>
module attributes {stable_mosaic.version = 11 : i64} {
  func.func @_swish_kernel(%arg0: i32, %arg1: memref<1x2048xf32, #tpu.memory_space<vmem>>, %arg2: memref<1x2048xf32, #tpu.memory_space<vmem>>) attributes {dimension_semantics = [#tpu.dimension_semantics<parallel>], iteration_bounds = array<i64: 1>, scalar_prefetch = 0 : i64, scratch_operands = 0 : i64, tpu.core_type = #tpu.core_type<tc>, window_params = [{transform_indices = @transform_0, window_bounds = array<i64: 1, 2048>}, {transform_indices = @transform_1, window_bounds = array<i64: 1, 2048>}]} {
    %c0 = arith.constant 0 : index
    %c0_0 = arith.constant 0 : index
    %0 = vector.load %arg1[%c0, %c0_0] : memref<1x2048xf32, #tpu.memory_space<vmem>>, vector<1x2048xf32>
    %cst = arith.constant 0.000000e+00 : f32
    %1 = vector.broadcast %cst : f32 to vector<1x2048xf32>
    %2 = arith.subf %1, %0 : vector<1x2048xf32>
    %3 = math.exp %2 : vector<1x2048xf32>
    %cst_1 = arith.constant 1.000000e+00 : f32
    %4 = vector.broadcast %cst_1 : f32 to vector<1x2048xf32>
    %5 = arith.addf %4, %3 : vector<1x2048xf32>
    %6 = tpu.reciprocal %5 : vector<1x2048xf32> -> vector<1x2048xf32>
    %7 = arith.mulf %0, %6 : vector<1x2048xf32>
    %c0_2 = arith.constant 0 : index
    %c0_3 = arith.constant 0 : index
    %8 = vector.load %arg2[%c0_2, %c0_3] : memref<1x2048xf32, #tpu.memory_space<vmem>>, vector<1x2048xf32>
    tpu.vector_store %arg2[%c0_2, %c0_3], %7 {strides = array<i32>} : memref<1x2048xf32, #tpu.memory_space<vmem>>, vector<1x2048xf32>,
    return
  }
  func.func @transform_0(%arg0: i32) -> (i32, i32) {
    %c0_i32 = arith.constant 0 : i32
    %c0_i32_0 = arith.constant 0 : i32
    return %arg0, %c0_i32 : i32, i32
  }
  func.func @transform_1(%arg0: i32) -> (i32, i32) {
    %c0_i32 = arith.constant 0 : i32
    %c0_i32_0 = arith.constant 0 : i32
    return %arg0, %c0_i32 : i32, i32
  }
}

</mosaic_0001>

<llo_original>
// kernel: tpu_custom_call.1
$region0: #{tpu_custom_call.1}
  #allocation0 [shape = 'u32[]', space=smem, size = 0x4, offset = 0x4, fixed_abs, tag = 'smem constant byte address 0x4 - core index']
  #allocation1 [shape = 'u32[144,128]{1,0:T(1,128)}', space=vmem, size = 0x12000, scoped, tag = 'internal scratch']
  %s0 = inlined_call_operand.hbm [shape: f32[1,2048], index: 0, kind: input, shape index: {}]
  %s1 = inlined_call_operand.hbm [shape: f32[1,2048], index: 1, kind: output, shape index: {}]
  %s2 = sld [smem:[#allocation0]]
  $region18: #{tpu_custom_call.1} parent=0
    _
  %s4 = ssub.s32 1, %s2
  %s5 = scalar_select 0, %s4, %s2
  $region1: #{tpu_custom_call.1} parent=0
    #allocation2 [shape = 'u8[8192]{0}', space=vmem, size = 0x2000, scoped, tag = 'input window, operand 0, single buffered']
    #allocation3 [shape = 's32[1]{0}', space=sflag, size = 0x4, scoped, tag = 'scoped memory for tpu_custom_call.1']
    #allocation4 [shape = 's32[1]{0}', space=sflag, size = 0x4, scoped, tag = 'scoped memory for tpu_custom_call.1']
    #allocation5 [shape = 'u8[8192]{0}', space=vmem, size = 0x2000, scoped, tag = 'output window, operand 0, single buffered']
    %6 = vsyncpa [#allocation3], 0
    %7 = vsyncpa [#allocation4], 0
    // Predicated region
    $region2: #{tpu_custom_call.1} parent=1 // pred_check
      _
    $region3: #{tpu_custom_call.1} parent=1 // pred_check_branch
      %9 = sbr.rel (0) target = $region5
    $region4: #{tpu_custom_call.1} parent=1 // pred_region
      %s11 = ssub.s32 256, 256
      %12 = vsyncadd [#allocation3], %s11
      %s14 = sshll.u32 [#allocation2], 4
      %s15 = int_to_ptr.vmem [resolvable:$true] %s14
      %17 = dma.hbm_to_vmem [thread:$0]  %s0, 256, %s15, [#allocation3]
    $region5: #{tpu_custom_call.1} parent=1 // pred_fallthru
      _
    // Predicated region
    $region6: #{tpu_custom_call.1} parent=1 // pred_check
      _
    $region7: #{tpu_custom_call.1} parent=1 // pred_check_branch
      %19 = sbr.rel (0) target = $region9
    $region8: #{tpu_custom_call.1} parent=1 // pred_region
      %20 = dma.done [#allocation3], 256
    $region9: #{tpu_custom_call.1} parent=1 // pred_fallthru
      _
    %v21 = vld [vmem:[#allocation2] sm:$0xff]
    %v22 = vld [vmem:[#allocation2 + $0x8] sm:$0xff]
    %v23 = vsub.f32 0.0, %v21
    %v24 = vsub.f32 0.0, %v22
    %v25 = vmul.f32 %v23, 1.442695
    %v26 = vpow.pop %v25
    %v27 = vmul.f32 %v24, 1.442695
    %v28 = vpow.pop %v27
    %v29 = vadd.f32 %v26, 1.0
    %v30 = vadd.f32 %v28, 1.0
    %v31 = vrcp.pop %v29
    %v32 = vrcp.pop %v30
    %v33 = vmul.f32 %v21, %v31
    %v34 = vmul.f32 %v22, %v32
    %35 = vst [vmem:[#allocation5] sm:$0xff] %v33
    %36 = vst [vmem:[#allocation5 + $0x8] sm:$0xff] %v34
    // Predicated region
    $region10: #{tpu_custom_call.1} parent=1 // pred_check
      _
    $region11: #{tpu_custom_call.1} parent=1 // pred_check_branch
      %38 = sbr.rel (0) target = $region13
    $region12: #{tpu_custom_call.1} parent=1 // pred_region
      %s40 = ssub.s32 256, 256
      %41 = vsyncadd [#allocation4], %s40
      %s43 = sshll.u32 [#allocation5], 4
      %s44 = int_to_ptr.vmem [resolvable:$true] %s43
      %46 = dma.vmem_to_hbm [thread:$0]  %s44, 256, %s1, [#allocation4]
    $region13: #{tpu_custom_call.1} parent=1 // pred_fallthru
      _
    // Predicated region
    $region14: #{tpu_custom_call.1} parent=1 // pred_check
      _
    $region15: #{tpu_custom_call.1} parent=1 // pred_check_branch
      %48 = sbr.rel (0) target = $region17
    $region16: #{tpu_custom_call.1} parent=1 // pred_region
      %49 = dma.done [#allocation4], 256
    $region17: #{tpu_custom_call.1} parent=1 // pred_fallthru
      _
    %50 = vsyncpa [#allocation3], 1
    %51 = vsyncpa [#allocation4], 1

</llo_original>
